<compile_context>
chip_gen: v7x
topology: tpu7x:2x2x1
jax: 0.10.0
libtpu: 0.0.40
codegen_flags: <defaults>
</compile_context>

<pallas_src>
import functools

import jax
import jax.numpy as jnp
import numpy as np
from jax.experimental import pallas as pl
from jax.experimental.pallas import tpu as pltpu


def _round_up(n, m):
    return ((n + m - 1) // m) * m


def _vmem_policy():
    """Per-generation (tile budget, compiler scoped-VMEM limit) in bytes."""
    cap = 64 * 1024 * 1024                      # conservative fallback (v7x physical)
    try:
        cap = int(pltpu.get_tpu_info().vmem_capacity_bytes)
    except Exception:
        pass
    tile_budget = max(12 << 20, (cap * 3) // 8)  # ~48 MiB on 128 MiB parts, ~24 MiB on v7x
    vmem_limit = min((cap * 3) // 4, 112 << 20)  # explicit scoped limit, with headroom
    return tile_budget, vmem_limit


def _choose_spatial_tile(n, cp, mp, np_, budget_bytes):
    """Largest lane-aligned (multiple-of-128) spatial tile under the VMEM budget.

    A cdiv grid + in-kernel masking handles the partial last tile, so T never
    has to divide n.
    """
    # Per-spatial-column VMEM bytes (double-buffered IO + f32 temporaries):
    k1 = 4 * cp + 8 * mp + 24 * np_      # x (bf16 x2) + A temp + B/p/V/sm temps + sv out (bf16 x2)
    k2 = 4 * np_ + 12 * mp               # sv in (bf16 x2) + z temp + f32 out (x2)
    bytes_per_col = max(k1, k2)
    max_t = max(128, budget_bytes // bytes_per_col)
    if n <= max_t:
        return n                          # full extent: always a legal last block dim
    return max(128, (max_t // 128) * 128)


def _g_kernel(x_ref, wa_ref, ba_ref, wb_ref, wv_ref, bv_ref,
              g_ref, sv_ref, m_sc, l_sc, acc_sc, *, mm_dtype, n_valid, tile):
    """One (batch-group, K-slice, spatial-tile) step of the G pass.

    x_ref  : (1, 1, Cp, T)  bf16 input tile (channel-major)
    wa/ba  : (mp, Cp) bf16 / (mp, 1) f32    convA weight/bias
    wb     : (np, Cp) bf16                  convB weight (bias cancels in softmax)
    wv/bv  : (np, Cp) bf16 / (np, 1) f32    convV weight/bias (-1e9 on padded rows)
    g_ref  : (1, mp, np)  f32   per-group G, written on the last reduction step
    sv_ref : (1, 1, np, T) bf16 tile-local softmaxV, written every step
    scratch: m_sc/l_sc (np, 1) running max/sum, acc_sc (np, mp) = Ghat^T
    """
    k = pl.program_id(1)
    t = pl.program_id(2)
    first = jnp.logical_and(k == 0, t == 0)
    last = jnp.logical_and(k == pl.num_programs(1) - 1,
                           t == pl.num_programs(2) - 1)

    @pl.when(first)
    def _():
        m_sc[...] = jnp.full(m_sc.shape, -jnp.inf, dtype=m_sc.dtype)
        l_sc[...] = jnp.zeros(l_sc.shape, dtype=l_sc.dtype)
        acc_sc[...] = jnp.zeros(acc_sc.shape, dtype=acc_sc.dtype)

    xt = x_ref[0, 0]                                                   # (Cp, T), bf16

    # 1x1 convolutions == channel matmuls (NN, contracting Cp), f32 accumulation.
    a_t = jax.lax.dot_general(wa_ref[...], xt, (((1,), (0,)), ((), ())),
                              preferred_element_type=jnp.float32) + ba_ref[...]
    b_t = jax.lax.dot_general(wb_ref[...], xt, (((1,), (0,)), ((), ())),
                              preferred_element_type=jnp.float32)
    v_t = jax.lax.dot_general(wv_ref[...], xt, (((1,), (0,)), ((), ())),
                              preferred_element_type=jnp.float32) + bv_ref[...]
    # convB's per-channel bias is constant along the spatial softmax axis and
    # cancels exactly -> intentionally not added.

    # Mask out-of-bounds columns of the partial last tile (only emitted when the
    # tile does not divide the spatial extent; static decision).
    if (n_valid % tile) != 0:
        col = t * tile + jax.lax.broadcasted_iota(jnp.int32, (1, tile), 1)
        valid = col < n_valid
        a_t = jnp.where(valid, a_t, 0.0)
        b_t = jnp.where(valid, b_t, -jnp.inf)

    # ---- tile-local softmax over the c_n channel axis (cached for pass 2).
    sm = v_t - jnp.max(v_t, axis=0, keepdims=True)
    e_v = jnp.exp(sm)
    s_v = e_v * pl.reciprocal(jnp.sum(e_v, axis=0, keepdims=True), approx=True)
    sv_ref[0, 0] = s_v.astype(sv_ref.dtype)

    # ---- online softmax over the joint (K, spatial) axis, per c_n row (f32 math).
    m_new = jnp.maximum(m_sc[...], jnp.max(b_t, axis=1, keepdims=True))   # (np, 1)
    alpha = jnp.exp(m_sc[...] - m_new)                                    # (np, 1)
    p = jnp.exp(b_t - m_new)                                              # (np, T)
    l_sc[...] = alpha * l_sc[...] + jnp.sum(p, axis=1, keepdims=True)
    m_sc[...] = m_new

    # Ghat^T += p @ A^T (NT contraction over the shared spatial axis; transposed
    # accumulator so the alpha rescale broadcasts along lanes).
    acc_sc[...] = alpha * acc_sc[...] + jax.lax.dot_general(
        p.astype(mm_dtype), a_t.astype(mm_dtype),
        (((1,), (1,)), ((), ())), preferred_element_type=jnp.float32)     # (np, mp)

    @pl.when(last)
    def _():
        inv_l = 1.0 / l_sc[...]          # exact: runs once per batch group, free
        g_ref[0] = (acc_sc[...] * inv_l).T.astype(g_ref.dtype)


def _z_kernel(g_ref, sv_ref, o_ref, *, mm_dtype):
    """Z tile = G @ softmaxV_tile (softmaxV already cached by the G pass)."""
    z = jax.lax.dot_general(
        g_ref[0].astype(mm_dtype), sv_ref[0, 0],
        (((1,), (0,)), ((), ())), preferred_element_type=jnp.float32)     # (mp, T)
    o_ref[0, 0] = z.astype(o_ref.dtype)


def a2net_forward(x, wa, ba, wb, bb, wv, bv, *, c_m, c_n, K=1,
                  matmul_dtype=jnp.bfloat16, spatial_tile=None):
    """x: (b, in_channels, h, w) NCHW. Returns (b, c_m, h, w)."""
    b, C, h, w = x.shape
    assert b % K == 0
    batch = b // K
    N = h * w

    del bb  # constant along the spatial softmax axis -> cancels exactly.

    Cp = _round_up(C, 8)
    mp = _round_up(c_m, 8)
    npad = _round_up(c_n, 8)

    # (b, C, h, w) -> (batch, K, Cp, N): free reshape + channel pad; single bf16 cast.
    xg = x.reshape(batch, K, C, N)
    if Cp != C:
        xg = jnp.pad(xg, ((0, 0), (0, 0), (0, Cp - C), (0, 0)))
    xg = xg.astype(matmul_dtype)

    # Pre-cast / pad weights once (bf16 MXU operands); biases stay f32.  Padded V
    # channels get a -1e9 bias so they vanish exactly in softmaxV.
    wa_p = jnp.zeros((mp, Cp), matmul_dtype).at[:c_m, :C].set(wa.astype(matmul_dtype))
    wb_p = jnp.zeros((npad, Cp), matmul_dtype).at[:c_n, :C].set(wb.astype(matmul_dtype))
    wv_p = jnp.zeros((npad, Cp), matmul_dtype).at[:c_n, :C].set(wv.astype(matmul_dtype))
    ba_p = jnp.zeros((mp, 1), jnp.float32).at[:c_m, 0].set(ba.astype(jnp.float32))
    bv_p = jnp.full((npad, 1), -1e9, jnp.float32).at[:c_n, 0].set(bv.astype(jnp.float32))

    budget, vmem_limit = _vmem_policy()
    if spatial_tile is not None:
        T = min(int(spatial_tile), N)    # caller-forced tile (must be mult of 128 or >= N)
    else:
        T = _choose_spatial_tile(N, Cp, mp, npad, budget)
    nt = (N + T - 1) // T

    # ---- kernel 1: G (online softmax over (K, spatial)) + cached softmaxV tiles.
    g, sv = pl.pallas_call(
        functools.partial(_g_kernel, mm_dtype=matmul_dtype, n_valid=N, tile=T),
        out_shape=(jax.ShapeDtypeStruct((batch, mp, npad), jnp.float32),
                   jax.ShapeDtypeStruct((batch, K, npad, N), matmul_dtype)),
        grid_spec=pltpu.PrefetchScalarGridSpec(
            num_scalar_prefetch=0,
            grid=(batch, K, nt),
            in_specs=[
                pl.BlockSpec((1, 1, Cp, T), lambda i, k, t: (i, k, 0, t)),
                pl.BlockSpec((mp, Cp), lambda i, k, t: (0, 0)),
                pl.BlockSpec((mp, 1), lambda i, k, t: (0, 0)),
                pl.BlockSpec((npad, Cp), lambda i, k, t: (0, 0)),
                pl.BlockSpec((npad, Cp), lambda i, k, t: (0, 0)),
                pl.BlockSpec((npad, 1), lambda i, k, t: (0, 0)),
            ],
            out_specs=[
                pl.BlockSpec((1, mp, npad), lambda i, k, t: (i, 0, 0)),
                pl.BlockSpec((1, 1, npad, T), lambda i, k, t: (i, k, 0, t)),
            ],
            scratch_shapes=[
                pltpu.VMEM((npad, 1), jnp.float32),   # running max
                pltpu.VMEM((npad, 1), jnp.float32),   # running sum
                pltpu.VMEM((npad, mp), jnp.float32),  # Ghat^T accumulator
            ],
        ),
        compiler_params=pltpu.CompilerParams(
            dimension_semantics=("parallel", "arbitrary", "arbitrary"),
            vmem_limit_bytes=vmem_limit),
    )(xg, wa_p, ba_p, wb_p, wv_p, bv_p)

    # ---- kernel 2: Z tiles = G @ softmaxV_tile (no re-read of x).
    out = pl.pallas_call(
        functools.partial(_z_kernel, mm_dtype=matmul_dtype),
        out_shape=jax.ShapeDtypeStruct((batch, K, mp, N), x.dtype),
        grid_spec=pltpu.PrefetchScalarGridSpec(
            num_scalar_prefetch=0,
            grid=(batch, K, nt),
            in_specs=[
                pl.BlockSpec((1, mp, npad), lambda i, k, t: (i, 0, 0)),
                pl.BlockSpec((1, 1, npad, T), lambda i, k, t: (i, k, 0, t)),
            ],
            out_specs=pl.BlockSpec((1, 1, mp, T), lambda i, k, t: (i, k, 0, t)),
        ),
        compiler_params=pltpu.CompilerParams(
            dimension_semantics=("parallel", "parallel", "parallel"),
            vmem_limit_bytes=vmem_limit),
    )(g, sv)

    # Strip channel padding; (batch, K, c_m, N) -> (b, c_m, h, w) is a free reshape.
    z = out[:, :, :c_m, :]
    return z.reshape(b, c_m, h, w)


def _reference(x, wa, ba, wb, bb, wv, bv, *, c_m, c_n, K=1):
    """Pure-JAX f32 replica of the PyTorch forward, for verification."""
    b, C, h, w = x.shape
    N = h * w
    batch = b // K

    def conv1x1(x, wgt, bias):
        return jnp.einsum("oc,bcn->bon", wgt, x.reshape(b, C, N)) + bias[None, :, None]

    A = conv1x1(x, wa, ba)
    B = conv1x1(x, wb, bb)
    V = conv1x1(x, wv, bv)

    tmpA = A.reshape(batch, K, c_m, N).transpose(0, 2, 1, 3).reshape(batch, c_m, K * N)
    tmpB = B.reshape(batch, K, c_n, N).transpose(0, 2, 1, 3).reshape(batch * c_n, K * N)
    tmpV = V.reshape(batch, K, c_n, N).transpose(0, 1, 3, 2).reshape(b * N, c_n)

    softmaxB = jax.nn.softmax(tmpB, axis=-1).reshape(batch, c_n, K * N).transpose(0, 2, 1)
    softmaxV = jax.nn.softmax(tmpV, axis=-1).reshape(batch, K * N, c_n).transpose(0, 2, 1)

    tmpG = jnp.einsum("bmn,bnc->bmc", tmpA, softmaxB)
    tmpZ = jnp.einsum("bmc,bcn->bmn", tmpG, softmaxV)
    return tmpZ.reshape(batch, c_m, K, N).transpose(0, 2, 1, 3).reshape(b, c_m, h, w)


if __name__ == "__main__":
    def make_case(key, b, C, h, w, c_m, c_n):
        kx, ka, kab, kb, kbb, kv, kvb = jax.random.split(key, 7)
        x = jax.random.normal(kx, (b, C, h, w), dtype=jnp.float32)
        wa = 0.1 * jax.random.normal(ka, (c_m, C), dtype=jnp.float32)
        ba = 0.1 * jax.random.normal(kab, (c_m,), dtype=jnp.float32)
        wb = 0.1 * jax.random.normal(kb, (c_n, C), dtype=jnp.float32)
        bb = 0.1 * jax.random.normal(kbb, (c_n,), dtype=jnp.float32)
        wv = 0.1 * jax.random.normal(kv, (c_n, C), dtype=jnp.float32)
        bv = 0.1 * jax.random.normal(kvb, (c_n,), dtype=jnp.float32)
        return x, wa, ba, wb, bb, wv, bv

    # Case 1: nominal small shape (batch=2, in_channels=4, 16x16, K=1);
    # single full-extent spatial tile.
    b, C, h, w, c_m, c_n, K = 2, 4, 16, 16, 4, 4, 1
    args = make_case(jax.random.PRNGKey(0), b, C, h, w, c_m, c_n)
    out = jax.block_until_ready(a2net_forward(*args, c_m=c_m, c_n=c_n, K=K))
    ref = jax.block_until_ready(_reference(*args, c_m=c_m, c_n=c_n, K=K))
    assert out.shape == (b, c_m, h, w)
    np.testing.assert_allclose(np.asarray(out), np.asarray(ref), rtol=5e-2, atol=1e-2)

    # Case 2: K=2 grouping + forced 128-wide tile so the cdiv grid's masked
    # partial last tile (N=400 -> 3 full tiles + 16 columns) is exercised.
    b, C, h, w, c_m, c_n, K = 4, 4, 20, 20, 4, 4, 2
    args = make_case(jax.random.PRNGKey(1), b, C, h, w, c_m, c_n)
    out = jax.block_until_ready(
        a2net_forward(*args, c_m=c_m, c_n=c_n, K=K, spatial_tile=128))
    ref = jax.block_until_ready(_reference(*args, c_m=c_m, c_n=c_n, K=K))
    assert out.shape == (b, c_m, h, w)
    np.testing.assert_allclose(np.asarray(out), np.asarray(ref), rtol=5e-2, atol=1e-2)

    print("KERNEL_OK")
</pallas_src>

<mosaic_0001>
module attributes {stable_mosaic.version = 11 : i64} {
  func.func @_g_kernel(%arg0: i32, %arg1: i32, %arg2: i32, %arg3: memref<1x1x8x256xbf16, #tpu.memory_space<vmem>>, %arg4: memref<8x8xbf16, #tpu.memory_space<vmem>>, %arg5: memref<8x1xf32, #tpu.memory_space<vmem>>, %arg6: memref<8x8xbf16, #tpu.memory_space<vmem>>, %arg7: memref<8x8xbf16, #tpu.memory_space<vmem>>, %arg8: memref<8x1xf32, #tpu.memory_space<vmem>>, %arg9: memref<1x8x8xf32, #tpu.memory_space<vmem>>, %arg10: memref<1x1x8x256xbf16, #tpu.memory_space<vmem>>, %arg11: memref<8x1xf32, #tpu.memory_space<vmem>>, %arg12: memref<8x1xf32, #tpu.memory_space<vmem>>, %arg13: memref<8x8xf32, #tpu.memory_space<vmem>>) attributes {dimension_semantics = [#tpu.dimension_semantics<parallel>, #tpu.dimension_semantics<arbitrary>, #tpu.dimension_semantics<arbitrary>], iteration_bounds = array<i64: 2, 1, 1>, scalar_prefetch = 0 : i64, scratch_operands = 3 : i64, tpu.core_type = #tpu.core_type<tc>, window_params = [{transform_indices = @transform_0, window_bounds = array<i64: 1, 1, 8, 256>}, {pipeline_mode = #tpu.pipeline_mode<synchronous>, transform_indices = @transform_1, window_bounds = array<i64: 8, 8>}, {pipeline_mode = #tpu.pipeline_mode<synchronous>, transform_indices = @transform_2, window_bounds = array<i64: 8, 1>}, {pipeline_mode = #tpu.pipeline_mode<synchronous>, transform_indices = @transform_3, window_bounds = array<i64: 8, 8>}, {pipeline_mode = #tpu.pipeline_mode<synchronous>, transform_indices = @transform_4, window_bounds = array<i64: 8, 8>}, {pipeline_mode = #tpu.pipeline_mode<synchronous>, transform_indices = @transform_5, window_bounds = array<i64: 8, 1>}, {transform_indices = @transform_6, window_bounds = array<i64: 1, 8, 8>}, {transform_indices = @transform_7, window_bounds = array<i64: 1, 1, 8, 256>}]} {
    %c0_i32 = arith.constant 0 : i32
    %0 = arith.cmpi eq, %arg1, %c0_i32 : i32
    %c0_i32_0 = arith.constant 0 : i32
    %1 = arith.cmpi eq, %arg2, %c0_i32_0 : i32
    %2 = arith.andi %0, %1 : i1
    %c0_i32_1 = arith.constant 0 : i32
    %3 = arith.cmpi eq, %arg1, %c0_i32_1 : i32
    %c0_i32_2 = arith.constant 0 : i32
    %4 = arith.cmpi eq, %arg2, %c0_i32_2 : i32
    %5 = arith.andi %3, %4 : i1
    %6 = arith.extui %2 : i1 to i32
    %c0_i32_3 = arith.constant 0 : i32
    %7 = arith.cmpi ne, %6, %c0_i32_3 : i32
    scf.if %7 {
      %cst_43 = arith.constant 0xFF800000 : f32
      %63 = vector.broadcast %cst_43 : f32 to vector<8x1xf32>
      %c0_44 = arith.constant 0 : index
      %c0_45 = arith.constant 0 : index
      %64 = vector.load %arg11[%c0_44, %c0_45] : memref<8x1xf32, #tpu.memory_space<vmem>>, vector<8x1xf32>
      tpu.vector_store %arg11[%c0_44, %c0_45], %63 {strides = array<i32>} : memref<8x1xf32, #tpu.memory_space<vmem>>, vector<8x1xf32>,
      %cst_46 = arith.constant 0.000000e+00 : f32
      %65 = vector.broadcast %cst_46 : f32 to vector<8x1xf32>
      %c0_47 = arith.constant 0 : index
      %c0_48 = arith.constant 0 : index
      %66 = vector.load %arg12[%c0_47, %c0_48] : memref<8x1xf32, #tpu.memory_space<vmem>>, vector<8x1xf32>
      tpu.vector_store %arg12[%c0_47, %c0_48], %65 {strides = array<i32>} : memref<8x1xf32, #tpu.memory_space<vmem>>, vector<8x1xf32>,
      %cst_49 = arith.constant 0.000000e+00 : f32
      %67 = vector.broadcast %cst_49 : f32 to vector<8x8xf32>
      %c0_50 = arith.constant 0 : index
      %c0_51 = arith.constant 0 : index
      %68 = vector.load %arg13[%c0_50, %c0_51] : memref<8x8xf32, #tpu.memory_space<vmem>>, vector<8x8xf32>
      tpu.vector_store %arg13[%c0_50, %c0_51], %67 {strides = array<i32>} : memref<8x8xf32, #tpu.memory_space<vmem>>, vector<8x8xf32>,
    } else {
    }
    %c0 = arith.constant 0 : index
    %c0_4 = arith.constant 0 : index
    %c0_5 = arith.constant 0 : index
    %c0_6 = arith.constant 0 : index
    %8 = vector.load %arg3[%c0, %c0_4, %c0_5, %c0_6] : memref<1x1x8x256xbf16, #tpu.memory_space<vmem>>, vector<1x1x8x256xbf16>
    %9 = vector.shape_cast %8 : vector<1x1x8x256xbf16> to vector<8x256xbf16>
    %c0_7 = arith.constant 0 : index
    %c0_8 = arith.constant 0 : index
    %10 = vector.load %arg4[%c0_7, %c0_8] : memref<8x8xbf16, #tpu.memory_space<vmem>>, vector<8x8xbf16>
    %cst = arith.constant dense<0.000000e+00> : vector<8x256xf32>
    %11 = tpu.matmul %10, %9, %cst {dimension_numbers = #tpu.dot_dimension_numbers<[1], [0], [0], [1], [0, 0, 1, 1], [], []>} : vector<8x8xbf16>, vector<8x256xbf16>, vector<8x256xf32> -> vector<8x256xf32>
    %c0_9 = arith.constant 0 : index
    %c0_10 = arith.constant 0 : index
    %12 = vector.load %arg5[%c0_9, %c0_10] : memref<8x1xf32, #tpu.memory_space<vmem>>, vector<8x1xf32>
    %13 = vector.broadcast %12 : vector<8x1xf32> to vector<8x256xf32>
    %14 = arith.addf %11, %13 : vector<8x256xf32>
    %c0_11 = arith.constant 0 : index
    %c0_12 = arith.constant 0 : index
    %15 = vector.load %arg6[%c0_11, %c0_12] : memref<8x8xbf16, #tpu.memory_space<vmem>>, vector<8x8xbf16>
    %cst_13 = arith.constant dense<0.000000e+00> : vector<8x256xf32>
    %16 = tpu.matmul %15, %9, %cst_13 {dimension_numbers = #tpu.dot_dimension_numbers<[1], [0], [0], [1], [0, 0, 1, 1], [], []>} : vector<8x8xbf16>, vector<8x256xbf16>, vector<8x256xf32> -> vector<8x256xf32>
    %c0_14 = arith.constant 0 : index
    %c0_15 = arith.constant 0 : index
    %17 = vector.load %arg7[%c0_14, %c0_15] : memref<8x8xbf16, #tpu.memory_space<vmem>>, vector<8x8xbf16>
    %cst_16 = arith.constant dense<0.000000e+00> : vector<8x256xf32>
    %18 = tpu.matmul %17, %9, %cst_16 {dimension_numbers = #tpu.dot_dimension_numbers<[1], [0], [0], [1], [0, 0, 1, 1], [], []>} : vector<8x8xbf16>, vector<8x256xbf16>, vector<8x256xf32> -> vector<8x256xf32>
    %c0_17 = arith.constant 0 : index
    %c0_18 = arith.constant 0 : index
    %19 = vector.load %arg8[%c0_17, %c0_18] : memref<8x1xf32, #tpu.memory_space<vmem>>, vector<8x1xf32>
    %20 = vector.broadcast %19 : vector<8x1xf32> to vector<8x256xf32>
    %21 = arith.addf %18, %20 : vector<8x256xf32>
    %cst_19 = arith.constant dense<0xFF800000> : vector<256xf32>
    %22 = vector.multi_reduction <maximumf>, %21, %cst_19 [0] : vector<8x256xf32> to vector<256xf32>
    %23 = vector.shape_cast %22 : vector<256xf32> to vector<1x256xf32>
    %24 = vector.broadcast %23 : vector<1x256xf32> to vector<8x256xf32>
    %25 = arith.subf %21, %24 : vector<8x256xf32>
    %26 = math.exp %25 : vector<8x256xf32>
    %cst_20 = arith.constant dense<0.000000e+00> : vector<256xf32>
    %27 = vector.multi_reduction <add>, %26, %cst_20 [0] : vector<8x256xf32> to vector<256xf32>
    %28 = vector.shape_cast %27 : vector<256xf32> to vector<1x256xf32>
    %29 = tpu.reciprocal %28 {approx = true} : vector<1x256xf32> -> vector<1x256xf32>
    %30 = vector.broadcast %29 : vector<1x256xf32> to vector<8x256xf32>
    %31 = arith.mulf %26, %30 : vector<8x256xf32>
    %32 = arith.truncf %31 : vector<8x256xf32> to vector<8x256xbf16>
    %c0_21 = arith.constant 0 : index
    %c0_22 = arith.constant 0 : index
    %c0_23 = arith.constant 0 : index
    %c0_24 = arith.constant 0 : index
    %33 = vector.load %arg10[%c0_21, %c0_22, %c0_23, %c0_24] : memref<1x1x8x256xbf16, #tpu.memory_space<vmem>>, vector<1x1x8x256xbf16>
    %34 = vector.shape_cast %33 : vector<1x1x8x256xbf16> to vector<8x256xbf16>
    %35 = vector.shape_cast %32 : vector<8x256xbf16> to vector<1x1x8x256xbf16>
    tpu.vector_store %arg10[%c0_21, %c0_22, %c0_23, %c0_24], %35 {strides = array<i32>} : memref<1x1x8x256xbf16, #tpu.memory_space<vmem>>, vector<1x1x8x256xbf16>,
    %c0_25 = arith.constant 0 : index
    %c0_26 = arith.constant 0 : index
    %36 = vector.load %arg11[%c0_25, %c0_26] : memref<8x1xf32, #tpu.memory_space<vmem>>, vector<8x1xf32>
    %cst_27 = arith.constant dense<0xFF800000> : vector<8xf32>
    %37 = vector.multi_reduction <maximumf>, %16, %cst_27 [1] : vector<8x256xf32> to vector<8xf32>
    %38 = vector.shape_cast %37 : vector<8xf32> to vector<8x1xf32>
    %39 = arith.maximumf %36, %38 : vector<8x1xf32>
    %c0_28 = arith.constant 0 : index
    %c0_29 = arith.constant 0 : index
    %40 = vector.load %arg11[%c0_28, %c0_29] : memref<8x1xf32, #tpu.memory_space<vmem>>, vector<8x1xf32>
    %41 = arith.subf %40, %39 : vector<8x1xf32>
    %42 = math.exp %41 : vector<8x1xf32>
    %43 = vector.broadcast %39 : vector<8x1xf32> to vector<8x256xf32>
    %44 = arith.subf %16, %43 : vector<8x256xf32>
    %45 = math.exp %44 : vector<8x256xf32>
    %c0_30 = arith.constant 0 : index
    %c0_31 = arith.constant 0 : index
    %46 = vector.load %arg12[%c0_30, %c0_31] : memref<8x1xf32, #tpu.memory_space<vmem>>, vector<8x1xf32>
    %47 = arith.mulf %42, %46 : vector<8x1xf32>
    %cst_32 = arith.constant dense<0.000000e+00> : vector<8xf32>
    %48 = vector.multi_reduction <add>, %45, %cst_32 [1] : vector<8x256xf32> to vector<8xf32>
    %49 = vector.shape_cast %48 : vector<8xf32> to vector<8x1xf32>
    %50 = arith.addf %47, %49 : vector<8x1xf32>
    %c0_33 = arith.constant 0 : index
    %c0_34 = arith.constant 0 : index
    %51 = vector.load %arg12[%c0_33, %c0_34] : memref<8x1xf32, #tpu.memory_space<vmem>>, vector<8x1xf32>
    tpu.vector_store %arg12[%c0_33, %c0_34], %50 {strides = array<i32>} : memref<8x1xf32, #tpu.memory_space<vmem>>, vector<8x1xf32>,
    %c0_35 = arith.constant 0 : index
    %c0_36 = arith.constant 0 : index
    %52 = vector.load %arg11[%c0_35, %c0_36] : memref<8x1xf32, #tpu.memory_space<vmem>>, vector<8x1xf32>
    tpu.vector_store %arg11[%c0_35, %c0_36], %39 {strides = array<i32>} : memref<8x1xf32, #tpu.memory_space<vmem>>, vector<8x1xf32>,
    %c0_37 = arith.constant 0 : index
    %c0_38 = arith.constant 0 : index
    %53 = vector.load %arg13[%c0_37, %c0_38] : memref<8x8xf32, #tpu.memory_space<vmem>>, vector<8x8xf32>
    %54 = vector.broadcast %42 : vector<8x1xf32> to vector<8x8xf32>
    %55 = arith.mulf %54, %53 : vector<8x8xf32>
    %56 = arith.truncf %45 : vector<8x256xf32> to vector<8x256xbf16>
    %57 = arith.truncf %14 : vector<8x256xf32> to vector<8x256xbf16>
    %cst_39 = arith.constant dense<0.000000e+00> : vector<8x8xf32>
    %58 = tpu.matmul %56, %57, %cst_39 {dimension_numbers = #tpu.dot_dimension_numbers<[1], [1], [0], [0], [0, 0, 1, 0], [], []>} : vector<8x256xbf16>, vector<8x256xbf16>, vector<8x8xf32> -> vector<8x8xf32>
    %59 = arith.addf %55, %58 : vector<8x8xf32>
    %c0_40 = arith.constant 0 : index
    %c0_41 = arith.constant 0 : index
    %60 = vector.load %arg13[%c0_40, %c0_41] : memref<8x8xf32, #tpu.memory_space<vmem>>, vector<8x8xf32>
    tpu.vector_store %arg13[%c0_40, %c0_41], %59 {strides = array<i32>} : memref<8x8xf32, #tpu.memory_space<vmem>>, vector<8x8xf32>,
    %61 = arith.extui %5 : i1 to i32
    %c0_i32_42 = arith.constant 0 : i32
    %62 = arith.cmpi ne, %61, %c0_i32_42 : i32
    scf.if %62 {
      %c0_43 = arith.constant 0 : index
      %c0_44 = arith.constant 0 : index
      %63 = vector.load %arg12[%c0_43, %c0_44] : memref<8x1xf32, #tpu.memory_space<vmem>>, vector<8x1xf32>
      %cst_45 = arith.constant 1.000000e+00 : f32
      %64 = vector.broadcast %cst_45 : f32 to vector<8x1xf32>
      %65 = arith.divf %64, %63 : vector<8x1xf32>
      %c0_46 = arith.constant 0 : index
      %c0_47 = arith.constant 0 : index
      %66 = vector.load %arg13[%c0_46, %c0_47] : memref<8x8xf32, #tpu.memory_space<vmem>>, vector<8x8xf32>
      %67 = vector.broadcast %65 : vector<8x1xf32> to vector<8x8xf32>
      %68 = arith.mulf %66, %67 : vector<8x8xf32>
      %69 = tpu.transpose %68, [1, 0] : vector<8x8xf32> -> vector<8x8xf32>
      %c0_48 = arith.constant 0 : index
      %c0_49 = arith.constant 0 : index
      %c0_50 = arith.constant 0 : index
      %70 = vector.load %arg9[%c0_48, %c0_49, %c0_50] : memref<1x8x8xf32, #tpu.memory_space<vmem>>, vector<1x8x8xf32>
      %71 = vector.shape_cast %70 : vector<1x8x8xf32> to vector<8x8xf32>
      %72 = vector.shape_cast %69 : vector<8x8xf32> to vector<1x8x8xf32>
      tpu.vector_store %arg9[%c0_48, %c0_49, %c0_50], %72 {strides = array<i32>} : memref<1x8x8xf32, #tpu.memory_space<vmem>>, vector<1x8x8xf32>,
    } else {
    }
    return
  }
  func.func @transform_0(%arg0: i32, %arg1: i32, %arg2: i32) -> (i32, i32, i32, i32) {
    %c0_i32 = arith.constant 0 : i32
    %c0_i32_0 = arith.constant 0 : i32
    return %arg0, %arg1, %c0_i32, %arg2 : i32, i32, i32, i32
  }
  func.func @transform_1(%arg0: i32, %arg1: i32, %arg2: i32) -> (i32, i32) {
    %c0_i32 = arith.constant 0 : i32
    %c0_i32_0 = arith.constant 0 : i32
    %c0_i32_1 = arith.constant 0 : i32
    return %c0_i32, %c0_i32_0 : i32, i32
  }
  func.func @transform_2(%arg0: i32, %arg1: i32, %arg2: i32) -> (i32, i32) {
    %c0_i32 = arith.constant 0 : i32
    %c0_i32_0 = arith.constant 0 : i32
    %c0_i32_1 = arith.constant 0 : i32
    return %c0_i32, %c0_i32_0 : i32, i32
  }
  func.func @transform_3(%arg0: i32, %arg1: i32, %arg2: i32) -> (i32, i32) {
    %c0_i32 = arith.constant 0 : i32
    %c0_i32_0 = arith.constant 0 : i32
    %c0_i32_1 = arith.constant 0 : i32
    return %c0_i32, %c0_i32_0 : i32, i32
  }
  func.func @transform_4(%arg0: i32, %arg1: i32, %arg2: i32) -> (i32, i32) {
    %c0_i32 = arith.constant 0 : i32
    %c0_i32_0 = arith.constant 0 : i32
    %c0_i32_1 = arith.constant 0 : i32
    return %c0_i32, %c0_i32_0 : i32, i32
  }
  func.func @transform_5(%arg0: i32, %arg1: i32, %arg2: i32) -> (i32, i32) {
    %c0_i32 = arith.constant 0 : i32
    %c0_i32_0 = arith.constant 0 : i32
    %c0_i32_1 = arith.constant 0 : i32
    return %c0_i32, %c0_i32_0 : i32, i32
  }
  func.func @transform_6(%arg0: i32, %arg1: i32, %arg2: i32) -> (i32, i32, i32) {
    %c0_i32 = arith.constant 0 : i32
    %c0_i32_0 = arith.constant 0 : i32
    %c0_i32_1 = arith.constant 0 : i32
    return %arg0, %c0_i32, %c0_i32_0 : i32, i32, i32
  }
  func.func @transform_7(%arg0: i32, %arg1: i32, %arg2: i32) -> (i32, i32, i32, i32) {
    %c0_i32 = arith.constant 0 : i32
    %c0_i32_0 = arith.constant 0 : i32
    return %arg0, %arg1, %c0_i32, %arg2 : i32, i32, i32, i32
  }
}

</mosaic_0001>

<llo_original>
// kernel: tpu_custom_call.1
$region0: #{tpu_custom_call.1}
  #allocation0 [shape = 'u32[]', space=smem, size = 0x4, offset = 0x4, fixed_abs, tag = 'smem constant byte address 0x4 - core index']
  #allocation1 [shape = 'u32[144,128]{1,0:T(1,128)}', space=vmem, size = 0x12000, scoped, tag = 'internal scratch']
  #allocation2 [shape = 'f32[8,1]{1,0:T(8,128)}', space=vmem, size = 0x1000, scoped, tag = 'scratch operand']
  #allocation3 [shape = 'f32[8,1]{1,0:T(8,128)}', space=vmem, size = 0x1000, scoped, tag = 'scratch operand']
  #allocation4 [shape = 'f32[8,8]{1,0:T(8,128)}', space=vmem, size = 0x1000, scoped, tag = 'scratch operand']
  %s0 = inlined_call_operand.vmem [shape: bf16[2,1,8,256], index: 0, kind: input, shape index: {}]
  %s1 = inlined_call_operand.vmem [shape: bf16[8,8], index: 1, kind: input, shape index: {}]
  %s2 = inlined_call_operand.vmem [shape: f32[8,1], index: 2, kind: input, shape index: {}]
  %s3 = inlined_call_operand.vmem [shape: bf16[8,8], index: 3, kind: input, shape index: {}]
  %s4 = inlined_call_operand.vmem [shape: bf16[8,8], index: 4, kind: input, shape index: {}]
  %s5 = inlined_call_operand.vmem [shape: f32[8,1], index: 5, kind: input, shape index: {}]
  %s6 = inlined_call_operand.hbm [shape: f32[2,8,8], index: 6, kind: output, shape index: {0}]
  %s7 = inlined_call_operand.hbm [shape: bf16[2,1,8,256], index: 7, kind: output, shape index: {1}]
  %8 = xla_tuple %s6, %s7
  %s9 = sld [smem:[#allocation0]]
  $region73: #{tpu_custom_call.1} parent=0
    _
  %s11 = ssub.s32 1, %s9
  %s12 = scalar_select 0, %s11, %s9
  $region1: #{tpu_custom_call.1} parent=0
    #allocation5 [shape = 'u8[8192]{0}', space=vmem, size = 0x2000, scoped, tag = 'output window, operand 0']
    #allocation6 [shape = 's32[2]{0}', space=sflag, size = 0x8, scoped, tag = 'scoped memory for tpu_custom_call.1']
    #allocation7 [shape = 'u8[8192]{0}', space=vmem, size = 0x2000, scoped, tag = 'output window, operand 1']
    #allocation8 [shape = 's32[2]{0}', space=sflag, size = 0x8, scoped, tag = 'scoped memory for tpu_custom_call.1']
    %13 = vsyncpa [#allocation6], 0
    %s14 = scalar_lea.sflag [#allocation6], 1
    %15 = vsyncpa %s14, 0
    %16 = vsyncpa [#allocation8], 0
    %s17 = scalar_lea.sflag [#allocation8], 1
    %18 = vsyncpa %s17, 0
    loop: start=0, step=1, limit=4
    $region2: #{tpu_custom_call.1} parent=1 // loop_pre_header
      _
    $region3: #{tpu_custom_call.1} parent=1 // loop_header
      %s20 = sphi 0, %s24
      %p21 = scmp.ge.s32.totalorder %s20, 4
      %s27 = sphi 0, %s46
      %s28 = sphi 0, %s42
      %s29 = sphi 0, %s38
      %s30 = sphi 0, %s27
      %s31 = sphi 0, %s28
      %s32 = sphi 0, %s29
      %s33 = sphi 0, %s30
      %s34 = sphi 0, %s31
      %s35 = sphi 0, %s32
      %s53 = sphi 0, %s55
      %s56 = sphi 0, %s53
      %s57 = sphi 0, %s56
      %s73 = sphi 0, %s57
      %s77 = sphi 0, %s77
      %s79 = sphi 0, %s77
      %s80 = sphi 0, %s79
      %s94 = sphi 0, %s80
      %s98 = sphi 0, %s98
      %s100 = sphi 0, %s98
      %s101 = sphi 0, %s100
      %s115 = sphi 0, %s101
      %s119 = sphi 0, %s119
      %s121 = sphi 0, %s119
      %s122 = sphi 0, %s121
      %s136 = sphi 0, %s122
      %s140 = sphi 0, %s140
      %s142 = sphi 0, %s140
      %s143 = sphi 0, %s142
      %s157 = sphi 0, %s143
      %s161 = sphi 0, %s161
      %s163 = sphi 0, %s161
      %s164 = sphi 0, %s163
      %s178 = sphi 0, %s164
      %s184 = sphi 0, %s186
      %s187 = sphi 0, %s184
      %s188 = sphi 0, %s187
      %s204 = sphi 0, %s188
      %s214 = sphi 0, %s216
      %s217 = sphi 0, %s214
      %s218 = sphi 0, %s217
      %s234 = sphi 0, %s218
    $region4: #{tpu_custom_call.1} parent=1 // loop_header_branch
      %23 = sbr.rel (%p21) target = $region8
    $region5: #{tpu_custom_call.1} parent=1 // loop_body
      %s25 = ssub.s32 %s20, 1
      %s26 = ssub.s32 %s20, 2
      %s36 = sadd.s32 1, %s29
      %p37 = scmp.ge.s32.totalorder %s36, 1
      %s38 = scalar_select %p37, 0, %s36
      %s39 = sadd.s32 1, %s28
      %s40 = scalar_select %p37, %s39, %s28
      %p41 = scmp.ge.s32.totalorder %s40, 1
      %s42 = scalar_select %p41, 0, %s40
      %s43 = sadd.s32 1, %s27
      %s44 = scalar_select %p41, %s43, %s27
      %p45 = scmp.ge.s32.totalorder %s44, 2
      %s46 = scalar_select %p45, 0, %s44
      %s47 = ssub.s32 %s27, %s46
      %s48 = ssub.s32 %s28, %s42
      %s49 = sor.u32 %s47, %s48
      %s50 = ssub.s32 %s29, %s38
      %s51 = sor.u32 %s49, %s50
      %p52 = scmp.eq.s32.totalorder %s51, 0
      %s54 = sadd.s32 %s53, 1
      %s55 = scalar_select %p52, %s53, %s54
      %p58 = pneg %p52
      %p59 = scmp.eq.s32.totalorder %s20, 1
      %p60 = por %p58, %p59
      %p61 = scmp.ne.s32.totalorder %s53, %s56
      %p62 = scmp.eq.s32.totalorder %s20, 0
      %p63 = por %p61, %p62
      %p64 = scmp.ne.s32.totalorder %s53, %s56
      %p65 = scmp.eq.s32.totalorder %s25, 1
      %p66 = por %p64, %p65
      %p67 = scmp.ne.s32.totalorder %s56, %s57
      %p68 = scmp.eq.s32.totalorder %s25, 0
      %p69 = por %p67, %p68
      %p70 = scmp.ne.s32.totalorder %s56, %s57
      %p71 = scmp.eq.s32.totalorder %s26, 1
      %p72 = por %p70, %p71
      %p74 = scmp.ne.s32.totalorder %s57, %s73
      %p75 = scmp.eq.s32.totalorder %s26, 0
      %p76 = por %p74, %p75
      %s78 = sadd.s32 %s77, 1
      %p81 = scmp.eq.s32.totalorder %s20, 1
      %p82 = scmp.ne.s32.totalorder %s77, %s79
      %p83 = scmp.eq.s32.totalorder %s20, 0
      %p84 = por %p82, %p83
      %p85 = scmp.ne.s32.totalorder %s77, %s79
      %p86 = scmp.eq.s32.totalorder %s25, 1
      %p87 = por %p85, %p86
      %p88 = scmp.ne.s32.totalorder %s79, %s80
      %p89 = scmp.eq.s32.totalorder %s25, 0
      %p90 = por %p88, %p89
      %p91 = scmp.ne.s32.totalorder %s79, %s80
      %p92 = scmp.eq.s32.totalorder %s26, 1
      %p93 = por %p91, %p92
      %p95 = scmp.ne.s32.totalorder %s80, %s94
      %p96 = scmp.eq.s32.totalorder %s26, 0
      %p97 = por %p95, %p96
      %s99 = sadd.s32 %s98, 1
      %p102 = scmp.eq.s32.totalorder %s20, 1
      %p103 = scmp.ne.s32.totalorder %s98, %s100
      %p104 = scmp.eq.s32.totalorder %s20, 0
      %p105 = por %p103, %p104
      %p106 = scmp.ne.s32.totalorder %s98, %s100
      %p107 = scmp.eq.s32.totalorder %s25, 1
      %p108 = por %p106, %p107
      %p109 = scmp.ne.s32.totalorder %s100, %s101
      %p110 = scmp.eq.s32.totalorder %s25, 0
      %p111 = por %p109, %p110
      %p112 = scmp.ne.s32.totalorder %s100, %s101
      %p113 = scmp.eq.s32.totalorder %s26, 1
      %p114 = por %p112, %p113
      %p116 = scmp.ne.s32.totalorder %s101, %s115
      %p117 = scmp.eq.s32.totalorder %s26, 0
      %p118 = por %p116, %p117
      %s120 = sadd.s32 %s119, 1
      %p123 = scmp.eq.s32.totalorder %s20, 1
      %p124 = scmp.ne.s32.totalorder %s119, %s121
      %p125 = scmp.eq.s32.totalorder %s20, 0
      %p126 = por %p124, %p125
      %p127 = scmp.ne.s32.totalorder %s119, %s121
      %p128 = scmp.eq.s32.totalorder %s25, 1
      %p129 = por %p127, %p128
      %p130 = scmp.ne.s32.totalorder %s121, %s122
      %p131 = scmp.eq.s32.totalorder %s25, 0
      %p132 = por %p130, %p131
      %p133 = scmp.ne.s32.totalorder %s121, %s122
      %p134 = scmp.eq.s32.totalorder %s26, 1
      %p135 = por %p133, %p134
      %p137 = scmp.ne.s32.totalorder %s122, %s136
      %p138 = scmp.eq.s32.totalorder %s26, 0
      %p139 = por %p137, %p138
      %s141 = sadd.s32 %s140, 1
      %p144 = scmp.eq.s32.totalorder %s20, 1
      %p145 = scmp.ne.s32.totalorder %s140, %s142
      %p146 = scmp.eq.s32.totalorder %s20, 0
      %p147 = por %p145, %p146
      %p148 = scmp.ne.s32.totalorder %s140, %s142
      %p149 = scmp.eq.s32.totalorder %s25, 1
      %p150 = por %p148, %p149
      %p151 = scmp.ne.s32.totalorder %s142, %s143
      %p152 = scmp.eq.s32.totalorder %s25, 0
      %p153 = por %p151, %p152
      %p154 = scmp.ne.s32.totalorder %s142, %s143
      %p155 = scmp.eq.s32.totalorder %s26, 1
      %p156 = por %p154, %p155
      %p158 = scmp.ne.s32.totalorder %s143, %s157
      %p159 = scmp.eq.s32.totalorder %s26, 0
      %p160 = por %p158, %p159
      %s162 = sadd.s32 %s161, 1
      %p165 = scmp.eq.s32.totalorder %s20, 1
      %p166 = scmp.ne.s32.totalorder %s161, %s163
      %p167 = scmp.eq.s32.totalorder %s20, 0
      %p168 = por %p166, %p167
      %p169 = scmp.ne.s32.totalorder %s161, %s163
      %p170 = scmp.eq.s32.totalorder %s25, 1
      %p171 = por %p169, %p170
      %p172 = scmp.ne.s32.totalorder %s163, %s164
      %p173 = scmp.eq.s32.totalorder %s25, 0
      %p174 = por %p172, %p173
      %p175 = scmp.ne.s32.totalorder %s163, %s164
      %p176 = scmp.eq.s32.totalorder %s26, 1
      %p177 = por %p175, %p176
      %p179 = scmp.ne.s32.totalorder %s164, %s178
      %p180 = scmp.eq.s32.totalorder %s26, 0
      %p181 = por %p179, %p180
      %s182 = ssub.s32 %s27, %s46
      %p183 = scmp.eq.s32.totalorder %s182, 0
      %s185 = sadd.s32 %s184, 1
      %s186 = scalar_select %p183, %s184, %s185
      %p189 = pneg %p183
      %p190 = scmp.eq.s32.totalorder %s20, 1
      %p191 = por %p189, %p190
      %p192 = scmp.ne.s32.totalorder %s184, %s187
      %p193 = scmp.eq.s32.totalorder %s20, 0
      %p194 = por %p192, %p193
      %p195 = scmp.ne.s32.totalorder %s184, %s187
      %p196 = scmp.eq.s32.totalorder %s25, 1
      %p197 = por %p195, %p196
      %p198 = scmp.ne.s32.totalorder %s187, %s188
      %p199 = scmp.eq.s32.totalorder %s25, 0
      %p200 = por %p198, %p199
      %p201 = scmp.ne.s32.totalorder %s187, %s188
      %p202 = scmp.eq.s32.totalorder %s26, 1
      %p203 = por %p201, %p202
      %p205 = scmp.ne.s32.totalorder %s188, %s204
      %p206 = scmp.eq.s32.totalorder %s26, 0
      %p207 = por %p205, %p206
      %s208 = ssub.s32 %s27, %s46
      %s209 = ssub.s32 %s28, %s42
      %s210 = sor.u32 %s208, %s209
      %s211 = ssub.s32 %s29, %s38
      %s212 = sor.u32 %s210, %s211
      %p213 = scmp.eq.s32.totalorder %s212, 0
      %s215 = sadd.s32 %s214, 1
      %s216 = scalar_select %p213, %s214, %s215
      %p219 = pneg %p213
      %p220 = scmp.eq.s32.totalorder %s20, 1
      %p221 = por %p219, %p220
      %p222 = scmp.ne.s32.totalorder %s214, %s217
      %p223 = scmp.eq.s32.totalorder %s20, 0
      %p224 = por %p222, %p223
      %p225 = scmp.ne.s32.totalorder %s214, %s217
      %p226 = scmp.eq.s32.totalorder %s25, 1
      %p227 = por %p225, %p226
      %p228 = scmp.ne.s32.totalorder %s217, %s218
      %p229 = scmp.eq.s32.totalorder %s25, 0
      %p230 = por %p228, %p229
      %p231 = scmp.ne.s32.totalorder %s217, %s218
      %p232 = scmp.eq.s32.totalorder %s26, 1
      %p233 = por %p231, %p232
      %p235 = scmp.ne.s32.totalorder %s218, %s234
      %p236 = scmp.eq.s32.totalorder %s26, 0
      %p237 = por %p235, %p236
      %p238 = scmp.le.s32.totalorder 1, %s20
      %p239 = scmp.lt.s32.totalorder %s20, 3
      %p240 = pnand %p238, %p239
      %p241 = pneg %p240
      // Predicated region
      $region9: #{tpu_custom_call.1} parent=5 // pred_check
        _
      $region10: #{tpu_custom_call.1} parent=5 // pred_check_branch
        %243 = sbr.rel (%p240) target = $region12
      $region11: #{tpu_custom_call.1} parent=5 // pred_region
        %s244 = ssub.s32 %s20, 1
        // Predicated region
        $region13: #{tpu_custom_call.1} parent=11 // pred_check
          %p245 = pneg %p90
        $region14: #{tpu_custom_call.1} parent=11 // pred_check_branch
          %247 = sbr.rel (%p245) target = $region16
        $region15: #{tpu_custom_call.1} parent=11 // pred_region
          _
        $region16: #{tpu_custom_call.1} parent=11 // pred_fallthru
          _
        // Predicated region
        $region17: #{tpu_custom_call.1} parent=11 // pred_check
          %p248 = pneg %p111
        $region18: #{tpu_custom_call.1} parent=11 // pred_check_branch
          %250 = sbr.rel (%p248) target = $region20
        $region19: #{tpu_custom_call.1} parent=11 // pred_region
          _
        $region20: #{tpu_custom_call.1} parent=11 // pred_fallthru
          _
        // Predicated region
        $region21: #{tpu_custom_call.1} parent=11 // pred_check
          %p251 = pneg %p132
        $region22: #{tpu_custom_call.1} parent=11 // pred_check_branch
          %253 = sbr.rel (%p251) target = $region24
        $region23: #{tpu_custom_call.1} parent=11 // pred_region
          _
        $region24: #{tpu_custom_call.1} parent=11 // pred_fallthru
          _
        // Predicated region
        $region25: #{tpu_custom_call.1} parent=11 // pred_check
          %p254 = pneg %p153
        $region26: #{tpu_custom_call.1} parent=11 // pred_check_branch
          %256 = sbr.rel (%p254) target = $region28
        $region27: #{tpu_custom_call.1} parent=11 // pred_region
          _
        $region28: #{tpu_custom_call.1} parent=11 // pred_fallthru
          _
        // Predicated region
        $region29: #{tpu_custom_call.1} parent=11 // pred_check
          %p257 = pneg %p174
        $region30: #{tpu_custom_call.1} parent=11 // pred_check_branch
          %259 = sbr.rel (%p257) target = $region32
        $region31: #{tpu_custom_call.1} parent=11 // pred_region
          _
        $region32: #{tpu_custom_call.1} parent=11 // pred_fallthru
          _
      $region12: #{tpu_custom_call.1} parent=5 // pred_fallthru
        _
      %p260 = scmp.lt.s32.totalorder %s20, 2
      // Predicated region
      $region33: #{tpu_custom_call.1} parent=5 // pred_check
        %p261 = pneg %p260
      $region34: #{tpu_custom_call.1} parent=5 // pred_check_branch
        %263 = sbr.rel (%p261) target = $region36
      $region35: #{tpu_custom_call.1} parent=5 // pred_region
        // Predicated region
        $region37: #{tpu_custom_call.1} parent=35 // pred_check
          %p264 = pneg %p63
        $region38: #{tpu_custom_call.1} parent=35 // pred_check_branch
          %266 = sbr.rel (%p264) target = $region40
        $region39: #{tpu_custom_call.1} parent=35 // pred_region
          %s267 = smul.u32 2, %s29
          %p268 = scmp.lt.s32.totalorder %s27, 1
          %s269 = scalar_select %p268, %s27, 1
          %p270 = scmp.lt.s32.totalorder %s28, 0
          %s271 = scalar_select %p270, %s28, 0
          %p272 = scmp.lt.s32.totalorder %s267, 1
          %s273 = scalar_select %p272, %s267, 1
          %s274 = smul.addr %s271, 2
          %s275 = sadd.s32 %s273, %s274
          %s276 = smul.addr %s269, 2
          %s277 = sadd.s32 %s275, %s276
          %s278 = smul.addr %s277, 4
          %s279 = scalar_lea.vmem %s0, %s278
          %s280 = smul.u32 2, %s29
        $region40: #{tpu_custom_call.1} parent=35 // pred_fallthru
          _
      $region36: #{tpu_custom_call.1} parent=5 // pred_fallthru
        _
      %p281 = scmp.le.s32.totalorder 1, %s20
      %p282 = scmp.lt.s32.totalorder %s20, 3
      %p283 = pnand %p281, %p282
      %p284 = pneg %p283
      // Predicated region
      $region41: #{tpu_custom_call.1} parent=5 // pred_check
        _
      $region42: #{tpu_custom_call.1} parent=5 // pred_check_branch
        %286 = sbr.rel (%p283) target = $region44
      $region43: #{tpu_custom_call.1} parent=5 // pred_region
        %s287 = ssub.s32 %s20, 1
        %s288 = smul.u32 2, %s32
        %p289 = scmp.lt.s32.totalorder %s30, 1
        %s290 = scalar_select %p289, %s30, 1
        %p291 = scmp.lt.s32.totalorder %s31, 0
        %s292 = scalar_select %p291, %s31, 0
        %p293 = scmp.lt.s32.totalorder %s288, 1
        %s294 = scalar_select %p293, %s288, 1
        %s295 = smul.addr %s292, 2
        %s296 = sadd.s32 %s294, %s295
        %s297 = smul.addr %s290, 2
        %s298 = sadd.s32 %s296, %s297
        %s299 = smul.addr %s298, 4
        %s300 = scalar_lea.vmem %s0, %s299
        %p301 = pneg %p69
        %p302 = pneg %p66
        %p303 = pneg %p90
        %p304 = pneg %p87
        %p305 = pneg %p111
        %p306 = pneg %p108
        %p307 = pneg %p132
        %p308 = pneg %p129
        %p309 = pneg %p153
        %p310 = pneg %p150
        %p311 = pneg %p174
        %p312 = pneg %p171
        %p313 = pneg %p200
        %p314 = pneg %p197
        %s315 = sand.u32 %s187, 1
        %s316 = scalar_lea.sflag [#allocation6], %s315
        %s317 = sand.u32 %s187, 1
        %s318 = smul.addr %s317, 8
        %s319 = scalar_lea.vmem [#allocation5], %s318
        %p320 = pneg %p230
        %p321 = pneg %p227
        %s322 = sand.u32 %s217, 1
        %s323 = scalar_lea.sflag [#allocation8], %s322
        %s324 = sand.u32 %s217, 1
        %s325 = smul.addr %s324, 8
        %s326 = scalar_lea.vmem [#allocation7], %s325
        %s327 = smul.u32 2, %s32
        %p328 = scmp.lt.s32.totalorder %s30, 1
        %s329 = scalar_select %p328, %s30, 1
        %p330 = scmp.lt.s32.totalorder %s31, 0
        %s331 = scalar_select %p330, %s31, 0
        %p332 = scmp.lt.s32.totalorder %s327, 1
        %s333 = scalar_select %p332, %s327, 1
        %s334 = smul.addr %s331, 2
        %s335 = sadd.s32 %s333, %s334
        %s336 = smul.addr %s329, 2
        %s337 = sadd.s32 %s335, %s336
        %s338 = smul.addr %s337, 4
        %s339 = scalar_lea.vmem %s0, %s338
        %s340 = smul.u32 2, %s32
        %s341 = smul.u32 2, %s32
        %p343 = scmp.eq.s32.totalorder %s31, 0
        %p344 = scmp.eq.s32.totalorder %s32, 0
        %p345 = pnand %p343, %p344
        %p346 = pneg %p345
        // Predicated region
        $region45: #{tpu_custom_call.1} parent=43 // pred_check
          _
        $region46: #{tpu_custom_call.1} parent=43 // pred_check_branch
          %348 = sbr.rel (%p345) target = $region48
        $region47: #{tpu_custom_call.1} parent=43 // pred_region
          %vm349 = vcmask 7168
          %350 = vst.msk [vmem:[#allocation2] sm:$0xff] %vm349, -inf
          %351 = vst.msk [vmem:[#allocation3] sm:$0xff] %vm349, 0.0
          %vm352 = vcmask 64512
          %353 = vst.msk [vmem:[#allocation4] sm:$0xff] %vm352, 0.0
        $region48: #{tpu_custom_call.1} parent=43 // pred_fallthru
          _
        %v354 = vld [vmem:[%s339] sm:$0xff]
        %v355 = vld [vmem:[%s1] sm:$0xf]
        %v356 = vld [vmem:[%s2] sm:$0xff]
        %358 = vset.pattern.permute.xlu0 0
        %359 = vperm.xlu0 %358, %v356
        %v360 = vpop.permute.xlu0 %359
        %v363 = vunpack.c.l.b16 %v354
        %v364 = vunpack.c.h.b16 %v354
        %v365 = vpack.c.b16 %v363, %v363
        %v366 = vpack.c.b16 %v364, %v364
        %vm367 = vcmask 64512
        %v369 = vsel %vm367, %v355, 0
        %vm371 = vcmask 1043456
        %v373 = vsel %vm371, %v365, 0
        %v376 = vsel %vm371, %v366, 0
        %378 = vmatprep.subr.bf16.mxu0 %v376
        %379 = vmatpush1.bf16.msra.mxu0 %v373
        %380 = vmatprep.subr.bf16.mxu0 0
        %381 = vmatpush1.bf16.msra.mxu0 0
        %382 = vmatprep.subr.bf16.mxu0 0
        %383 = vmatpush1.bf16.msra.mxu0 0
        %384 = vmatprep.subr.bf16.mxu0 0
        %385 = vmatpush1.bf16.msra.mxu0 0
        %386 = vmatprep.subr.bf16.mxu0 0
        %387 = vmatpush1.bf16.msra.mxu0 0
        %388 = vmatprep.subr.bf16.mxu0 0
        %389 = vmatpush1.bf16.msra.mxu0 0
        %390 = vmatprep.subr.bf16.mxu0 0
        %391 = vmatpush1.bf16.msra.mxu0 0
        %392 = vmatprep.subr.bf16.mxu0 0
        %393 = vmatpush1.bf16.msra.mxu0 0
        %394 = vmatprep.subr.bf16.mxu0 0
        %395 = vmatpush1.bf16.msra.mxu0 0
        %396 = vmatprep.subr.bf16.mxu0 0
        %397 = vmatpush1.bf16.msra.mxu0 0
        %398 = vmatprep.subr.bf16.mxu0 0
        %399 = vmatpush1.bf16.msra.mxu0 0
        %400 = vmatprep.subr.bf16.mxu0 0
        %401 = vmatpush1.bf16.msra.mxu0 0
        %402 = vmatprep.subr.bf16.mxu0 0
        %403 = vmatpush1.bf16.msra.mxu0 0
        %404 = vmatprep.subr.bf16.mxu0 0
        %405 = vmatpush1.bf16.msra.mxu0 0
        %406 = vmatprep.subr.bf16.mxu0 0
        %407 = vmatpush1.bf16.msra.mxu0 0
        %408 = vmatprep.subr.bf16.mxu0 0
        %409 = vmatpush1.bf16.msra.mxu0 0
        %410 = vmatprep.mubr.bf16.mxu0 0
        %411 = vmatmul.mubr.bf16.gmra.mrb[0].mxu0 %v369
        %v412 = vpop.f32.mrb[0].mxu0
        %v413 = vadd.f32 %v360, %v412
        %v414 = vpop.f32.mrb[0].mxu0
        %v415 = vadd.f32 %v360, %v414
        %v416 = vpop.f32.mrb[0].mxu0
        %v417 = vpop.f32.mrb[0].mxu0
        %418 = vdwg.mxu0
        %v419 = vld [vmem:[%s3] sm:$0xf]
        %v421 = vsel %vm367, %v419, 0
        %423 = vmatprep.subr.bf16.mxu0 %v376
        %424 = vmatpush1.bf16.msra.mxu0 %v373
        %425 = vmatprep.subr.bf16.mxu0 0
        %426 = vmatpush1.bf16.msra.mxu0 0
        %427 = vmatprep.subr.bf16.mxu0 0
        %428 = vmatpush1.bf16.msra.mxu0 0
        %429 = vmatprep.subr.bf16.mxu0 0
        %430 = vmatpush1.bf16.msra.mxu0 0
        %431 = vmatprep.subr.bf16.mxu0 0
        %432 = vmatpush1.bf16.msra.mxu0 0
        %433 = vmatprep.subr.bf16.mxu0 0
        %434 = vmatpush1.bf16.msra.mxu0 0
        %435 = vmatprep.subr.bf16.mxu0 0
        %436 = vmatpush1.bf16.msra.mxu0 0
        %437 = vmatprep.subr.bf16.mxu0 0
        %438 = vmatpush1.bf16.msra.mxu0 0
        %439 = vmatprep.subr.bf16.mxu0 0
        %440 = vmatpush1.bf16.msra.mxu0 0
        %441 = vmatprep.subr.bf16.mxu0 0
        %442 = vmatpush1.bf16.msra.mxu0 0
        %443 = vmatprep.subr.bf16.mxu0 0
        %444 = vmatpush1.bf16.msra.mxu0 0
        %445 = vmatprep.subr.bf16.mxu0 0
        %446 = vmatpush1.bf16.msra.mxu0 0
        %447 = vmatprep.subr.bf16.mxu0 0
        %448 = vmatpush1.bf16.msra.mxu0 0
        %449 = vmatprep.subr.bf16.mxu0 0
        %450 = vmatpush1.bf16.msra.mxu0 0
        %451 = vmatprep.subr.bf16.mxu0 0
        %452 = vmatpush1.bf16.msra.mxu0 0
        %453 = vmatprep.subr.bf16.mxu0 0
        %454 = vmatpush1.bf16.msra.mxu0 0
        %455 = vmatprep.mubr.bf16.mxu0 0
        %456 = vmatmul.mubr.bf16.gmra.mrb[0].mxu0 %v421
        %v457 = vpop.f32.mrb[0].mxu0
        %v458 = vadd.f32 0.0, %v457
        %v459 = vpop.f32.mrb[0].mxu0
        %v460 = vadd.f32 0.0, %v459
        %v461 = vpop.f32.mrb[0].mxu0
        %v462 = vpop.f32.mrb[0].mxu0
        %463 = vdwg.mxu0
        %v464 = vld [vmem:[%s4] sm:$0xf]
        %v465 = vld [vmem:[%s5] sm:$0xff]
        %467 = vset.pattern.permute.xlu0 0
        %468 = vperm.xlu0 %467, %v465
        %v469 = vpop.permute.xlu0 %468
        %v472 = vsel %vm367, %v464, 0
        %474 = vmatprep.subr.bf16.mxu0 %v376
        %475 = vmatpush1.bf16.msra.mxu0 %v373
        %476 = vmatprep.subr.bf16.mxu0 0
        %477 = vmatpush1.bf16.msra.mxu0 0
        %478 = vmatprep.subr.bf16.mxu0 0
        %479 = vmatpush1.bf16.msra.mxu0 0
        %480 = vmatprep.subr.bf16.mxu0 0
        %481 = vmatpush1.bf16.msra.mxu0 0
        %482 = vmatprep.subr.bf16.mxu0 0
        %483 = vmatpush1.bf16.msra.mxu0 0
        %484 = vmatprep.subr.bf16.mxu0 0
        %485 = vmatpush1.bf16.msra.mxu0 0
        %486 = vmatprep.subr.bf16.mxu0 0
        %487 = vmatpush1.bf16.msra.mxu0 0
        %488 = vmatprep.subr.bf16.mxu0 0
        %489 = vmatpush1.bf16.msra.mxu0 0
        %490 = vmatprep.subr.bf16.mxu0 0
        %491 = vmatpush1.bf16.msra.mxu0 0
        %492 = vmatprep.subr.bf16.mxu0 0
        %493 = vmatpush1.bf16.msra.mxu0 0
        %494 = vmatprep.subr.bf16.mxu0 0
        %495 = vmatpush1.bf16.msra.mxu0 0
        %496 = vmatprep.subr.bf16.mxu0 0
        %497 = vmatpush1.bf16.msra.mxu0 0
        %498 = vmatprep.subr.bf16.mxu0 0
        %499 = vmatpush1.bf16.msra.mxu0 0
        %500 = vmatprep.subr.bf16.mxu0 0
        %501 = vmatpush1.bf16.msra.mxu0 0
        %502 = vmatprep.subr.bf16.mxu0 0
        %503 = vmatpush1.bf16.msra.mxu0 0
        %504 = vmatprep.subr.bf16.mxu0 0
        %505 = vmatpush1.bf16.msra.mxu0 0
        %506 = vmatprep.mubr.bf16.mxu0 0
        %507 = vmatmul.mubr.bf16.gmra.mrb[0].mxu0 %v472
        %v508 = vpop.f32.mrb[0].mxu0
        %v509 = vadd.f32 %v469, %v508
        %v510 = vpop.f32.mrb[0].mxu0
        %v511 = vadd.f32 %v469, %v510
        %v512 = vpop.f32.mrb[0].mxu0
        %v513 = vpop.f32.mrb[0].mxu0
        %514 = vdwg.mxu0
        %v515 = vrot.slane %v509, 4
        %v516 = vmax.f32 %v509, %v515
        %v517 = vrot.slane %v516, 2
        %v518 = vmax.f32 %v516, %v517
        %v519 = vrot.slane %v518, 1
        %v520 = vmax.f32 %v518, %v519
        %v521 = vrot.slane %v511, 4
        %v522 = vmax.f32 %v511, %v521
        %v523 = vrot.slane %v522, 2
        %v524 = vmax.f32 %v522, %v523
        %v525 = vrot.slane %v524, 1
        %v526 = vmax.f32 %v524, %v525
        %v527 = vsub.f32 %v509, %v520
        %v528 = vsub.f32 %v511, %v526
        %v529 = vmul.f32 %v527, 1.442695
        %v530 = vpow.pop %v529
        %v531 = vmul.f32 %v528, 1.442695
        %v532 = vpow.pop %v531
        %v533 = vrot.slane %v530, 4
        %v534 = vadd.f32 %v530, %v533
        %v535 = vrot.slane %v534, 2
        %v536 = vadd.f32 %v534, %v535
        %v537 = vrot.slane %v536, 1
        %v538 = vadd.f32 %v536, %v537
        %v539 = vrot.slane %v532, 4
        %v540 = vadd.f32 %v532, %v539
        %v541 = vrot.slane %v540, 2
        %v542 = vadd.f32 %v540, %v541
        %v543 = vrot.slane %v542, 1
        %v544 = vadd.f32 %v542, %v543
        %v545 = vrcp.pop %v538
        %v546 = vrcp.pop %v544
        %v547 = vmul.f32 %v530, %v545
        %v548 = vmul.f32 %v532, %v546
        %v549 = vpack.c.bf16 %v547, %v547
        %v550 = vpack.c.bf16 %v548, %v548
        %v553 = vunpack.c.l.b16 %v549
        %v554 = vunpack.c.l.b16 %v550
        %v555 = vpack.c.b16 %v554, %v553
        %557 = vst [vmem:[%s326] sm:$0xff] %v555
        %v558 = vld [vmem:[#allocation2] sm:$0xff]
        %v559 = vmax.f32 %v458, %v460
        %560 = vmax.xlane.f32.xlu0 %v559
        %v561 = vpop.xlane.xlu0 %560
        %v562 = vmax.f32 %v558, %v561
        %v563 = vsub.f32 %v558, %v562
        %v564 = vmul.f32 %v563, 1.442695
        %v565 = vpow.pop %v564
        %567 = vset.pattern.permute.xlu0 0
        %568 = vperm.xlu0 %567, %v562
        %v569 = vpop.permute.xlu0 %568
        %v571 = vsub.f32 %v458, %v569
        %v572 = vsub.f32 %v460, %v569
        %v573 = vmul.f32 %v571, 1.442695
        %v574 = vpow.pop %v573
        %v575 = vmul.f32 %v572, 1.442695
        %v576 = vpow.pop %v575
        %v577 = vld [vmem:[#allocation3] sm:$0xff]
        %v578 = vmul.f32 %v565, %v577
        %v579 = vadd.f32 %v574, %v576
        %580 = vadd.xlane.f32.xlu0 %v579
        %v581 = vpop.xlane.xlu0 %580
        %v582 = vadd.f32 %v578, %v581
        %vm583 = vcmask 7168
        %584 = vst.msk [vmem:[#allocation3] sm:$0xff] %vm583, %v582
        %585 = vst.msk [vmem:[#allocation2] sm:$0xff] %vm583, %v562
        %v586 = vld [vmem:[#allocation4] sm:$0xff]
        %588 = vset.pattern.permute.xlu0 0
        %589 = vperm.xlu0 %588, %v565
        %v590 = vpop.permute.xlu0 %589
        %v592 = vmul.f32 %v590, %v586
        %v593 = vpack.c.bf16 %v574, %v574
        %v594 = vpack.c.bf16 %v576, %v576
        %v595 = vpack.c.bf16 %v413, %v413
        %v596 = vpack.c.bf16 %v415, %v415
        %597 = vmatprep.subr.bf16.mxu0 %v596
        %598 = vmatpush1.bf16.xpose.msra.mxu0 %v595
        %599 = vmatprep.subr.bf16.mxu0 0
        %600 = vmatpush1.bf16.xpose.msra.mxu0 0
        %601 = vmatprep.subr.bf16.mxu0 0
        %602 = vmatpush1.bf16.xpose.msra.mxu0 0
        %603 = vmatprep.subr.bf16.mxu0 0
        %604 = vmatpush1.bf16.xpose.msra.mxu0 0
        %605 = vmatprep.subr.bf16.mxu0 0
        %606 = vmatpush1.bf16.xpose.msra.mxu0 0
        %607 = vmatprep.subr.bf16.mxu0 0
        %608 = vmatpush1.bf16.xpose.msra.mxu0 0
        %609 = vmatprep.subr.bf16.mxu0 0
        %610 = vmatpush1.bf16.xpose.msra.mxu0 0
        %611 = vmatprep.subr.bf16.mxu0 0
        %612 = vmatpush1.bf16.xpose.msra.mxu0 0
        %613 = vmatprep.subr.bf16.mxu0 0
        %614 = vmatpush1.bf16.xpose.msra.mxu0 0
        %615 = vmatprep.subr.bf16.mxu0 0
        %616 = vmatpush1.bf16.xpose.msra.mxu0 0
        %617 = vmatprep.subr.bf16.mxu0 0
        %618 = vmatpush1.bf16.xpose.msra.mxu0 0
        %619 = vmatprep.subr.bf16.mxu0 0
        %620 = vmatpush1.bf16.xpose.msra.mxu0 0
        %621 = vmatprep.subr.bf16.mxu0 0
        %622 = vmatpush1.bf16.xpose.msra.mxu0 0
        %623 = vmatprep.subr.bf16.mxu0 0
        %624 = vmatpush1.bf16.xpose.msra.mxu0 0
        %625 = vmatprep.subr.bf16.mxu0 0
        %626 = vmatpush1.bf16.xpose.msra.mxu0 0
        %627 = vmatprep.subr.bf16.mxu0 0
        %628 = vmatpush1.bf16.xpose.msra.mxu0 0
        %629 = vmatprep.mubr.bf16.mxu0 %v594
        %630 = vmatmul.mubr.bf16.gmra.mrb[0].mxu0 %v593
        %v631 = vpop.f32.mrb[0].mxu0
        %v632 = vadd.f32 0.0, %v631
        %v633 = vpop.f32.mrb[0].mxu0
        %v634 = vpop.f32.mrb[0].mxu0
        %v635 = vpop.f32.mrb[0].mxu0
        %636 = vdwg.mxu0
        %v637 = vadd.f32 %v592, %v632
        %638 = vst.msk [vmem:[#allocation4] sm:$0xff] %vm367, %v637
        // Predicated region
        $region49: #{tpu_custom_call.1} parent=43 // pred_check
          _
        $region50: #{tpu_custom_call.1} parent=43 // pred_check_branch
          %640 = sbr.rel (%p345) target = $region52
        $region51: #{tpu_custom_call.1} parent=43 // pred_region
          %v641 = vld [vmem:[#allocation3] sm:$0xff]
          %v642 = vrcp.pop %v641
          %v643 = vmul.f32 1.0, %v642
          %v644 = vld [vmem:[#allocation4] sm:$0xff]
          %646 = vset.pattern.permute.xlu0 0
          %647 = vperm.xlu0 %646, %v643
          %v648 = vpop.permute.xlu0 %647
          %v650 = vmul.f32 %v644, %v648
          %651 = vxpose.xlu0.b32.start [1/16] %v650, 128
          %652 = vxpose.xlu0.b32.cont [2/16] 0.0, 128
          %653 = vxpose.xlu0.b32.cont [3/16] 0.0, 128
          %654 = vxpose.xlu0.b32.cont [4/16] 0.0, 128
          %655 = vxpose.xlu0.b32.cont [5/16] 0.0, 128
          %656 = vxpose.xlu0.b32.cont [6/16] 0.0, 128
          %657 = vxpose.xlu0.b32.cont [7/16] 0.0, 128
          %658 = vxpose.xlu0.b32.cont [8/16] 0.0, 128
          %659 = vxpose.xlu0.b32.cont [9/16] 0.0, 128
          %660 = vxpose.xlu0.b32.cont [10/16] 0.0, 128
          %661 = vxpose.xlu0.b32.cont [11/16] 0.0, 128
          %662 = vxpose.xlu0.b32.cont [12/16] 0.0, 128
          %663 = vxpose.xlu0.b32.cont [13/16] 0.0, 128
          %664 = vxpose.xlu0.b32.cont [14/16] 0.0, 128
          %665 = vxpose.xlu0.b32.cont [15/16] 0.0, 128
          %666 = vxpose.xlu0.b32.end [16/16] 0.0, 128
          %v667 = vpop.trf.xlu0
          %v668 = vpop.trf.xlu0
          %v669 = vpop.trf.xlu0
          %v670 = vpop.trf.xlu0
          %v671 = vpop.trf.xlu0
          %v672 = vpop.trf.xlu0
          %v673 = vpop.trf.xlu0
          %v674 = vpop.trf.xlu0
          %v675 = vpop.trf.xlu0
          %v676 = vpop.trf.xlu0
          %v677 = vpop.trf.xlu0
          %v678 = vpop.trf.xlu0
          %v679 = vpop.trf.xlu0
          %v680 = vpop.trf.xlu0
          %v681 = vpop.trf.xlu0
          %v682 = vpop.trf.xlu0
          %683 = vst.msk [vmem:[%s319] sm:$0xff] %vm367, %v667
        $region52: #{tpu_custom_call.1} parent=43 // pred_fallthru
          _
        %s684 = sand.u32 %s187, 1
        %s685 = scalar_lea.sflag [#allocation6], %s684
        %s686 = sand.u32 %s187, 1
        %s687 = smul.addr %s686, 8
        %s688 = scalar_lea.vmem [#allocation5], %s687
        %s689 = sand.u32 %s217, 1
        %s690 = scalar_lea.sflag [#allocation8], %s689
        %s691 = sand.u32 %s217, 1
        %s692 = smul.addr %s691, 8
        %s693 = scalar_lea.vmem [#allocation7], %s692
        // Predicated region
        $region53: #{tpu_custom_call.1} parent=43 // pred_check
          %p694 = pneg %p197
        $region54: #{tpu_custom_call.1} parent=43 // pred_check_branch
          %696 = sbr.rel (%p694) target = $region56
        $region55: #{tpu_custom_call.1} parent=43 // pred_region
          %s698 = ssub.s32 128, 128
          %699 = vsyncadd %s685, %s698
          %s700 = smul.addr %s30, 128
          %s701 = scalar_lea.hbm %s6, %s700
          %s703 = sshll.u32 %s688, 4
          %s704 = int_to_ptr.vmem [resolvable:$true] %s703
          %706 = dma.vmem_to_hbm [thread:$0]  %s704, 128, %s701, %s685
        $region56: #{tpu_custom_call.1} parent=43 // pred_fallthru
          _
        // Predicated region
        $region57: #{tpu_custom_call.1} parent=43 // pred_check
          %p707 = pneg %p227
        $region58: #{tpu_custom_call.1} parent=43 // pred_check_branch
          %709 = sbr.rel (%p707) target = $region60
        $region59: #{tpu_custom_call.1} parent=43 // pred_region
          %s710 = smul.u32 2, %s32
          %s712 = ssub.s32 128, 128
          %713 = vsyncadd %s690, %s712
          %s714 = smul.addr %s31, 2
          %s715 = sadd.s32 %s710, %s714
          %s716 = smul.addr %s30, 2
          %s717 = sadd.s32 %s715, %s716
          %s718 = smul.addr %s717, 64
          %s719 = scalar_lea.hbm %s7, %s718
          %s721 = sshll.u32 %s693, 4
          %s722 = int_to_ptr.vmem [resolvable:$true] %s721
          %724 = dma.vmem_to_hbm [thread:$0]  %s722, 128, %s719, %s690
        $region60: #{tpu_custom_call.1} parent=43 // pred_fallthru
          _
      $region44: #{tpu_custom_call.1} parent=5 // pred_fallthru
        _
      %p725 = scmp.le.s32.totalorder 2, %s20
      // Predicated region
      $region61: #{tpu_custom_call.1} parent=5 // pred_check
        %p726 = pneg %p725
      $region62: #{tpu_custom_call.1} parent=5 // pred_check_branch
        %728 = sbr.rel (%p726) target = $region64
      $region63: #{tpu_custom_call.1} parent=5 // pred_region
        %s729 = ssub.s32 %s20, 2
        // Predicated region
        $region65: #{tpu_custom_call.1} parent=63 // pred_check
          %p730 = pneg %p203
        $region66: #{tpu_custom_call.1} parent=63 // pred_check_branch
          %732 = sbr.rel (%p730) target = $region68
        $region67: #{tpu_custom_call.1} parent=63 // pred_region
          %s733 = sand.u32 %s188, 1
          %s734 = scalar_lea.sflag [#allocation6], %s733
          %s735 = sand.u32 %s188, 1
          %s736 = smul.addr %s735, 8
          %s737 = scalar_lea.vmem [#allocation5], %s736
          %738 = dma.done %s734, 128
        $region68: #{tpu_custom_call.1} parent=63 // pred_fallthru
          _
        // Predicated region
        $region69: #{tpu_custom_call.1} parent=63 // pred_check
          %p739 = pneg %p233
        $region70: #{tpu_custom_call.1} parent=63 // pred_check_branch
          %741 = sbr.rel (%p739) target = $region72
        $region71: #{tpu_custom_call.1} parent=63 // pred_region
          %s742 = sand.u32 %s218, 1
          %s743 = scalar_lea.sflag [#allocation8], %s742
          %s744 = sand.u32 %s218, 1
          %s745 = smul.addr %s744, 8
          %s746 = scalar_lea.vmem [#allocation7], %s745
          %747 = dma.done %s743, 128
        $region72: #{tpu_custom_call.1} parent=63 // pred_fallthru
          _
      $region64: #{tpu_custom_call.1} parent=5 // pred_fallthru
        _
    $region6: #{tpu_custom_call.1} parent=1 // loop_footer
      %s24 = sadd.s32 1, %s20
    $region7: #{tpu_custom_call.1} parent=1 // loop_footer_branch
      %19 = sbr.rel target = $region3
    $region8: #{tpu_custom_call.1} parent=1 // loop_exit
      _
    %748 = vsyncpa [#allocation6], 1
    %s749 = scalar_lea.sflag [#allocation6], 1
    %750 = vsyncpa %s749, 1
    %751 = vsyncpa [#allocation8], 1
    %s752 = scalar_lea.sflag [#allocation8], 1
    %753 = vsyncpa %s752, 1

</llo_original>
